<compile_context>
chip_gen: v5e
topology: v5e:2x2
jax: 0.10.0
libtpu: 0.0.40
codegen_flags: <defaults>
</compile_context>

<pallas_src>
import math

import jax
import jax.numpy as jnp
from jax import lax
from jax.experimental import pallas as pl
from jax.experimental.pallas import tpu as pltpu


# ---------------------------------------------------------------------------
# Kernel 1: fused gate projection, batched over all timesteps (time-parallel).
# ---------------------------------------------------------------------------
def _gates_kernel(x_ref, wgi_ref, bgi_ref, g_ref, i_ref):
    H = g_ref.shape[-1]                                   # static
    z = jnp.dot(x_ref[...], wgi_ref[...],
                preferred_element_type=jnp.float32) + bgi_ref[...]   # (tm, 2H)
    g_ref[...] = jax.nn.sigmoid(z[:, :H])
    i_ref[...] = jnp.tanh(z[:, H:])


# ---------------------------------------------------------------------------
# Kernel 2: sequential recurrence only (elementwise; no MXU in the loop).
# T timesteps per grid step; hidden state carried in VMEM scratch.
# ---------------------------------------------------------------------------
def _recurrence_kernel(g_ref, i_ref, h_ref, h_carry):
    @pl.when(pl.program_id(0) == 0)
    def _():
        h_carry[...] = jnp.zeros_like(h_carry)            # h_0 = zeros

    T = g_ref.shape[0]

    def body(t, h_prev):
        g = g_ref[t]                                      # (B, H)
        i_new = i_ref[t]                                  # (B, H)
        h_new = g * h_prev + (1.0 - g) * i_new
        h_ref[t] = h_new
        return h_new

    # Short fixed trip count -> unrolled for LLO scheduler visibility.
    h_carry[...] = lax.fori_loop(0, T, body, h_carry[...], unroll=True)


# ---------------------------------------------------------------------------
# Kernel 3: MLP head (Linear -> exact GELU -> Linear), batched over timesteps.
# ---------------------------------------------------------------------------
def _mlp_kernel(h_ref, w1_ref, b1_ref, w2_ref, b2_ref, out_ref):
    z = jnp.dot(h_ref[...], w1_ref[...],
                preferred_element_type=jnp.float32) + b1_ref[...]
    z = jax.nn.gelu(z, approximate=False)                 # matches nn.GELU default
    y = jnp.dot(z, w2_ref[...],
                preferred_element_type=jnp.float32) + b2_ref[...]
    out_ref[...] = y.astype(out_ref.dtype)


# ---------------------------------------------------------------------------
# Wrapper
# ---------------------------------------------------------------------------
def _row_tile(m):
    """Largest convenient row tile that evenly divides m."""
    for t in (512, 256, 128, 64, 32, 16, 8):
        if m % t == 0:
            return t
    return m


def _time_block(s):
    """Timesteps per sequential grid step (amortizes per-step grid overhead)."""
    for t in (32, 16, 8, 4, 2):
        if s % t == 0:
            return t
    return 1


def gilr_model_forward(x, params):
    """x: (S, B, input_size) float32 -> (S, B, output_size) float32."""
    S, B, In = x.shape
    wg, bg, wi, bi, w1, b1, w2, b2 = params
    H = wg.shape[1]
    F = w1.shape[1]
    O = w2.shape[1]

    # Fuse the two gate projections into a single (In, 2H) matmul.
    w_gi = jnp.concatenate([wg, wi], axis=1)              # (In, 2H)
    b_gi = jnp.concatenate([bg, bi], axis=1)              # (1, 2H)

    M = S * B
    tile_m = _row_tile(M)
    x_flat = x.reshape(M, In)

    full = lambda shape: pl.BlockSpec(shape, lambda m: tuple(0 for _ in shape))

    # ---- (1) batched gates: one well-shaped matmul for all timesteps -------
    g_flat, i_flat = pl.pallas_call(
        _gates_kernel,
        out_shape=(jax.ShapeDtypeStruct((M, H), jnp.float32),
                   jax.ShapeDtypeStruct((M, H), jnp.float32)),
        grid_spec=pltpu.PrefetchScalarGridSpec(
            num_scalar_prefetch=0,
            grid=(M // tile_m,),
            in_specs=[pl.BlockSpec((tile_m, In), lambda m: (m, 0)),
                      full((In, 2 * H)), full((1, 2 * H))],
            out_specs=(pl.BlockSpec((tile_m, H), lambda m: (m, 0)),
                       pl.BlockSpec((tile_m, H), lambda m: (m, 0))),
        ),
        compiler_params=pltpu.CompilerParams(
            dimension_semantics=("parallel",)),
    )(x_flat, w_gi, b_gi)

    g = g_flat.reshape(S, B, H)
    i = i_flat.reshape(S, B, H)

    # ---- (2) sequential recurrence: the only part with a time carry --------
    T = _time_block(S)
    h = pl.pallas_call(
        _recurrence_kernel,
        out_shape=jax.ShapeDtypeStruct((S, B, H), jnp.float32),
        grid_spec=pltpu.PrefetchScalarGridSpec(
            num_scalar_prefetch=0,
            grid=(S // T,),
            in_specs=[pl.BlockSpec((T, B, H), lambda tb: (tb, 0, 0)),
                      pl.BlockSpec((T, B, H), lambda tb: (tb, 0, 0))],
            out_specs=pl.BlockSpec((T, B, H), lambda tb: (tb, 0, 0)),
            scratch_shapes=[pltpu.VMEM((B, H), jnp.float32)],  # carried h
        ),
        compiler_params=pltpu.CompilerParams(
            dimension_semantics=("arbitrary",)),               # sequential carry
    )(g, i)

    # ---- (3) batched MLP head over all timesteps ----------------------------
    # TODO(synk): at these toy sizes O=8 < 128 lanes, so the HBM writeback is
    # still lane-sparse; a lane-dense repack only pays off at larger O or S*B.
    h_flat = h.reshape(M, H)
    out_flat = pl.pallas_call(
        _mlp_kernel,
        out_shape=jax.ShapeDtypeStruct((M, O), jnp.float32),
        grid_spec=pltpu.PrefetchScalarGridSpec(
            num_scalar_prefetch=0,
            grid=(M // tile_m,),
            in_specs=[pl.BlockSpec((tile_m, H), lambda m: (m, 0)),
                      full((H, F)), full((1, F)),
                      full((F, O)), full((1, O))],
            out_specs=pl.BlockSpec((tile_m, O), lambda m: (m, 0)),
        ),
        compiler_params=pltpu.CompilerParams(
            dimension_semantics=("parallel",)),
    )(h_flat, w1, b1, w2, b2)

    return out_flat.reshape(S, B, O)


# ---------------------------------------------------------------------------
# Init + pure-JAX reference (validation)
# ---------------------------------------------------------------------------
def _init_linear(key, in_features, out_features):
    """PyTorch nn.Linear-style uniform(-1/sqrt(in), 1/sqrt(in)).
    Weight returned pre-transposed to (in, out); bias as (1, out)."""
    kw, kb = jax.random.split(key)
    bound = 1.0 / math.sqrt(in_features)
    w = jax.random.uniform(kw, (in_features, out_features), jnp.float32, -bound, bound)
    b = jax.random.uniform(kb, (1, out_features), jnp.float32, -bound, bound)
    return w, b


def _reference_forward(x, params):
    wg, bg, wi, bi, w1, b1, w2, b2 = params
    B = x.shape[1]
    H = wg.shape[1]

    def step(h_old, x_t):
        g = jax.nn.sigmoid(x_t @ wg + bg)
        i = jnp.tanh(x_t @ wi + bi)
        h_new = g * h_old + (1.0 - g) * i
        return h_new, h_new

    _, hs = jax.lax.scan(step, jnp.zeros((B, H), jnp.float32), x)
    z = jax.nn.gelu(hs @ w1 + b1, approximate=False)
    return z @ w2 + b2


if __name__ == "__main__":
    # Small shapes consistent with the module.
    S, B = 8, 4
    input_size, lstm_size, fnn_size, output_size = 16, 32, 64, 8

    root = jax.random.PRNGKey(0)
    k_x, k_g, k_i, k_1, k_2 = jax.random.split(root, 5)

    x = jax.random.normal(k_x, (S, B, input_size), jnp.float32)

    wg, bg = _init_linear(k_g, input_size, lstm_size)
    wi, bi = _init_linear(k_i, input_size, lstm_size)
    w1, b1 = _init_linear(k_1, lstm_size, fnn_size)
    w2, b2 = _init_linear(k_2, fnn_size, output_size)
    params = (wg, bg, wi, bi, w1, b1, w2, b2)

    out = jax.block_until_ready(gilr_model_forward(x, params))
    ref = jax.block_until_ready(_reference_forward(x, params))

    assert out.shape == (S, B, output_size)
    assert jnp.allclose(out, ref, atol=1e-5, rtol=1e-5), "mismatch vs JAX reference"

    print("KERNEL_OK")
</pallas_src>

<mosaic_0001>
module attributes {stable_mosaic.version = 11 : i64} {
  func.func @_gates_kernel(%arg0: i32, %arg1: memref<32x16xf32, #tpu.memory_space<vmem>>, %arg2: memref<16x64xf32, #tpu.memory_space<vmem>>, %arg3: memref<1x64xf32, #tpu.memory_space<vmem>>, %arg4: memref<32x32xf32, #tpu.memory_space<vmem>>, %arg5: memref<32x32xf32, #tpu.memory_space<vmem>>) attributes {dimension_semantics = [#tpu.dimension_semantics<parallel>], iteration_bounds = array<i64: 1>, scalar_prefetch = 0 : i64, scratch_operands = 0 : i64, tpu.core_type = #tpu.core_type<tc>, window_params = [{transform_indices = @transform_0, window_bounds = array<i64: 32, 16>}, {pipeline_mode = #tpu.pipeline_mode<synchronous>, transform_indices = @transform_1, window_bounds = array<i64: 16, 64>}, {pipeline_mode = #tpu.pipeline_mode<synchronous>, transform_indices = @transform_2, window_bounds = array<i64: 1, 64>}, {transform_indices = @transform_3, window_bounds = array<i64: 32, 32>}, {transform_indices = @transform_4, window_bounds = array<i64: 32, 32>}]} {
    %c0 = arith.constant 0 : index
    %c0_0 = arith.constant 0 : index
    %0 = vector.load %arg1[%c0, %c0_0] : memref<32x16xf32, #tpu.memory_space<vmem>>, vector<32x16xf32>
    %c0_1 = arith.constant 0 : index
    %c0_2 = arith.constant 0 : index
    %1 = vector.load %arg2[%c0_1, %c0_2] : memref<16x64xf32, #tpu.memory_space<vmem>>, vector<16x64xf32>
    %cst = arith.constant dense<0.000000e+00> : vector<32x64xf32>
    %2 = tpu.matmul %0, %1, %cst {dimension_numbers = #tpu.dot_dimension_numbers<[1], [0], [0], [1], [0, 0, 1, 1], [], []>} : vector<32x16xf32>, vector<16x64xf32>, vector<32x64xf32> -> vector<32x64xf32>
    %c0_3 = arith.constant 0 : index
    %c0_4 = arith.constant 0 : index
    %3 = vector.load %arg3[%c0_3, %c0_4] : memref<1x64xf32, #tpu.memory_space<vmem>>, vector<1x64xf32>
    %4 = vector.broadcast %3 : vector<1x64xf32> to vector<32x64xf32>
    %5 = arith.addf %2, %4 : vector<32x64xf32>
    %6 = vector.extract_strided_slice %5 {offsets = [0, 0], sizes = [32, 32], strides = [1, 1]} : vector<32x64xf32> to vector<32x32xf32>
    %7 = arith.negf %6 : vector<32x32xf32>
    %8 = math.exp %7 : vector<32x32xf32>
    %cst_5 = arith.constant 1.000000e+00 : f32
    %9 = vector.broadcast %cst_5 : f32 to vector<32x32xf32>
    %10 = arith.addf %9, %8 : vector<32x32xf32>
    %11 = arith.divf %9, %10 : vector<32x32xf32>
    %c0_6 = arith.constant 0 : index
    %c0_7 = arith.constant 0 : index
    %12 = vector.load %arg4[%c0_6, %c0_7] : memref<32x32xf32, #tpu.memory_space<vmem>>, vector<32x32xf32>
    tpu.vector_store %arg4[%c0_6, %c0_7], %11 {strides = array<i32>} : memref<32x32xf32, #tpu.memory_space<vmem>>, vector<32x32xf32>,
    %13 = vector.extract_strided_slice %5 {offsets = [0, 32], sizes = [32, 32], strides = [1, 1]} : vector<32x64xf32> to vector<32x32xf32>
    %14 = math.tanh %13 : vector<32x32xf32>
    %c0_8 = arith.constant 0 : index
    %c0_9 = arith.constant 0 : index
    %15 = vector.load %arg5[%c0_8, %c0_9] : memref<32x32xf32, #tpu.memory_space<vmem>>, vector<32x32xf32>
    tpu.vector_store %arg5[%c0_8, %c0_9], %14 {strides = array<i32>} : memref<32x32xf32, #tpu.memory_space<vmem>>, vector<32x32xf32>,
    return
  }
  func.func @transform_0(%arg0: i32) -> (i32, i32) {
    %c0_i32 = arith.constant 0 : i32
    %c0_i32_0 = arith.constant 0 : i32
    return %arg0, %c0_i32 : i32, i32
  }
  func.func @transform_1(%arg0: i32) -> (i32, i32) {
    %c0_i32 = arith.constant 0 : i32
    %c0_i32_0 = arith.constant 0 : i32
    %c0_i32_1 = arith.constant 0 : i32
    return %c0_i32, %c0_i32_0 : i32, i32
  }
  func.func @transform_2(%arg0: i32) -> (i32, i32) {
    %c0_i32 = arith.constant 0 : i32
    %c0_i32_0 = arith.constant 0 : i32
    %c0_i32_1 = arith.constant 0 : i32
    return %c0_i32, %c0_i32_0 : i32, i32
  }
  func.func @transform_3(%arg0: i32) -> (i32, i32) {
    %c0_i32 = arith.constant 0 : i32
    %c0_i32_0 = arith.constant 0 : i32
    return %arg0, %c0_i32 : i32, i32
  }
  func.func @transform_4(%arg0: i32) -> (i32, i32) {
    %c0_i32 = arith.constant 0 : i32
    %c0_i32_0 = arith.constant 0 : i32
    return %arg0, %c0_i32 : i32, i32
  }
}

</mosaic_0001>

<llo_original>
// kernel: tpu_custom_call.1
$region0: #{tpu_custom_call.1}
  #allocation0 [shape = 'u32[]', space=smem, size = 0x4, offset = 0x4, fixed_abs, tag = 'smem constant byte address 0x4 - core index']
  #allocation1 [shape = 'u32[72,128]{1,0:T(1,128)}', space=vmem, size = 0x9000, scoped, tag = 'internal scratch']
  %s0 = inlined_call_operand.vmem [shape: f32[32,16], index: 0, kind: input, shape index: {}]
  %s1 = inlined_call_operand.vmem [shape: f32[16,64], index: 1, kind: input, shape index: {}]
  %s2 = inlined_call_operand.vmem [shape: f32[1,64], index: 2, kind: input, shape index: {}]
  %s3 = inlined_call_operand.hbm [shape: f32[32,32], index: 3, kind: output, shape index: {0}]
  %s4 = inlined_call_operand.hbm [shape: f32[32,32], index: 4, kind: output, shape index: {1}]
  %5 = xla_tuple %s3, %s4
  %s6 = sld [smem:[#allocation0]]
  $region30: #{tpu_custom_call.1} parent=0
    _
  %s8 = ssub.s32 1, %s6
  %s9 = scalar_select 0, %s8, %s6
  $region1: #{tpu_custom_call.1} parent=0
    #allocation2 [shape = 'u8[16384]{0}', space=vmem, size = 0x4000, scoped, tag = 'output window, operand 0, single buffered']
    #allocation3 [shape = 's32[1]{0}', space=sflag, size = 0x4, scoped, tag = 'scoped memory for tpu_custom_call.1']
    #allocation4 [shape = 'u8[16384]{0}', space=vmem, size = 0x4000, scoped, tag = 'output window, operand 1, single buffered']
    #allocation5 [shape = 's32[1]{0}', space=sflag, size = 0x4, scoped, tag = 'scoped memory for tpu_custom_call.1']
    %10 = vsyncpa [#allocation3], 0
    %11 = vsyncpa [#allocation5], 0
    // Predicated region
    $region2: #{tpu_custom_call.1} parent=1 // pred_check
      _
    $region3: #{tpu_custom_call.1} parent=1 // pred_check_branch
      %13 = sbr.rel (0) target = $region5
    $region4: #{tpu_custom_call.1} parent=1 // pred_region
      _
    $region5: #{tpu_custom_call.1} parent=1 // pred_fallthru
      _
    // Predicated region
    $region6: #{tpu_custom_call.1} parent=1 // pred_check
      _
    $region7: #{tpu_custom_call.1} parent=1 // pred_check_branch
      %15 = sbr.rel (0) target = $region9
    $region8: #{tpu_custom_call.1} parent=1 // pred_region
      _
    $region9: #{tpu_custom_call.1} parent=1 // pred_fallthru
      _
    // Predicated region
    $region10: #{tpu_custom_call.1} parent=1 // pred_check
      _
    $region11: #{tpu_custom_call.1} parent=1 // pred_check_branch
      %17 = sbr.rel (0) target = $region13
    $region12: #{tpu_custom_call.1} parent=1 // pred_region
      _
    $region13: #{tpu_custom_call.1} parent=1 // pred_fallthru
      _
    %v18 = vld [vmem:[%s0] sm:$0xff]
    %v19 = vld [vmem:[%s0 + $0x8] sm:$0xff]
    %v20 = vld [vmem:[%s0 + $0x10] sm:$0xff]
    %v21 = vld [vmem:[%s0 + $0x18] sm:$0xff]
    %v22 = vld [vmem:[%s1] sm:$0xff]
    %v23 = vld [vmem:[%s1 + $0x8] sm:$0xff]
    %v24 = vld [vmem:[%s2] sm:$0x1]
    %v26 = vperm.slane %v24, 0
    %vm28 = vcmask 130048
    %v30 = vsel %vm28, %v18, 0
    %v33 = vsel %vm28, %v19, 0
    %v36 = vsel %vm28, %v20, 0
    %v39 = vsel %vm28, %v21, 0
    %41 = vmatpush.msra.mxu0 0.0
    %42 = vmatpush.msra.mxu0 0.0
    %43 = vmatpush.msra.mxu0 0.0
    %44 = vmatpush.msra.mxu0 0.0
    %45 = vmatpush.msra.mxu0 0.0
    %46 = vmatpush.msra.mxu0 0.0
    %47 = vmatpush.msra.mxu0 0.0
    %48 = vmatpush.msra.mxu0 0.0
    %49 = vmatpush.msra.mxu0 0.0
    %50 = vmatpush.msra.mxu0 0.0
    %51 = vmatpush.msra.mxu0 0.0
    %52 = vmatpush.msra.mxu0 0.0
    %53 = vmatpush.msra.mxu0 0.0
    %54 = vmatpush.msra.mxu0 0.0
    %55 = vmatpush.msra.mxu0 %v23
    %56 = vmatpush.msra.mxu0 %v22
    %57 = vmatmul.f32.gmra.mxu0 %v30
    %v58 = vpop.f32.mrf.mxu0
    %v59 = vadd.f32 %v26, %v58
    %60 = vmatmul.f32.gmra.mxu0 %v33
    %v61 = vpop.f32.mrf.mxu0
    %v62 = vadd.f32 %v26, %v61
    %63 = vmatmul.f32.gmra.mxu0 %v36
    %v64 = vpop.f32.mrf.mxu0
    %v65 = vadd.f32 %v26, %v64
    %66 = vmatmul.f32.gmra.mxu0 %v39
    %v67 = vpop.f32.mrf.mxu0
    %v68 = vadd.f32 %v26, %v67
    %69 = vdwg.mxu0
    %v70 = vxor.u32 %v59, 2147483648
    %v71 = vxor.u32 %v62, 2147483648
    %v72 = vxor.u32 %v65, 2147483648
    %v73 = vxor.u32 %v68, 2147483648
    %v74 = vmul.f32 %v70, 1.442695
    %v75 = vpow.pop %v74
    %v76 = vmul.f32 %v71, 1.442695
    %v77 = vpow.pop %v76
    %v78 = vmul.f32 %v72, 1.442695
    %v79 = vpow.pop %v78
    %v80 = vmul.f32 %v73, 1.442695
    %v81 = vpow.pop %v80
    %v82 = vadd.f32 %v75, 1.0
    %v83 = vadd.f32 %v77, 1.0
    %v84 = vadd.f32 %v79, 1.0
    %v85 = vadd.f32 %v81, 1.0
    %v86 = vrcp.pop %v82
    %v87 = vmul.f32 %v82, %v86
    %v88 = vsub.f32 1.0, %v87
    %v89 = vmul.f32 %v86, %v88
    %v90 = vadd.f32 %v86, %v89
    %vm91 = vweird.f32 %v82
    %vm92 = vweird.f32 %v86
    %vm93 = vmor %vm91, %vm92
    %v94 = vsel %vm93, %v86, %v90
    %v95 = vand.u32 2147483647, %v82
    %vm96 = vcmp.eq.f32.partialorder %v95, 8.507059e+37
    %v97 = vand.u32 %v82, 2147483648
    %v98 = vor.u32 1.1754944e-38, %v97
    %v99 = vsel %vm96, %v98, %v94
    %v100 = vmul.f32 1.0, %v99
    %v101 = vrcp.pop %v83
    %v102 = vmul.f32 %v83, %v101
    %v103 = vsub.f32 1.0, %v102
    %v104 = vmul.f32 %v101, %v103
    %v105 = vadd.f32 %v101, %v104
    %vm106 = vweird.f32 %v83
    %vm107 = vweird.f32 %v101
    %vm108 = vmor %vm106, %vm107
    %v109 = vsel %vm108, %v101, %v105
    %v110 = vand.u32 2147483647, %v83
    %vm111 = vcmp.eq.f32.partialorder %v110, 8.507059e+37
    %v112 = vand.u32 %v83, 2147483648
    %v113 = vor.u32 1.1754944e-38, %v112
    %v114 = vsel %vm111, %v113, %v109
    %v115 = vmul.f32 1.0, %v114
    %v116 = vrcp.pop %v84
    %v117 = vmul.f32 %v84, %v116
    %v118 = vsub.f32 1.0, %v117
    %v119 = vmul.f32 %v116, %v118
    %v120 = vadd.f32 %v116, %v119
    %vm121 = vweird.f32 %v84
    %vm122 = vweird.f32 %v116
    %vm123 = vmor %vm121, %vm122
    %v124 = vsel %vm123, %v116, %v120
    %v125 = vand.u32 2147483647, %v84
    %vm126 = vcmp.eq.f32.partialorder %v125, 8.507059e+37
    %v127 = vand.u32 %v84, 2147483648
    %v128 = vor.u32 1.1754944e-38, %v127
    %v129 = vsel %vm126, %v128, %v124
    %v130 = vmul.f32 1.0, %v129
    %v131 = vrcp.pop %v85
    %v132 = vmul.f32 %v85, %v131
    %v133 = vsub.f32 1.0, %v132
    %v134 = vmul.f32 %v131, %v133
    %v135 = vadd.f32 %v131, %v134
    %vm136 = vweird.f32 %v85
    %vm137 = vweird.f32 %v131
    %vm138 = vmor %vm136, %vm137
    %v139 = vsel %vm138, %v131, %v135
    %v140 = vand.u32 2147483647, %v85
    %vm141 = vcmp.eq.f32.partialorder %v140, 8.507059e+37
    %v142 = vand.u32 %v85, 2147483648
    %v143 = vor.u32 1.1754944e-38, %v142
    %v144 = vsel %vm141, %v143, %v139
    %v145 = vmul.f32 1.0, %v144
    %vm146 = vcmask 261120
    %147 = vst.msk [vmem:[#allocation2] sm:$0xff] %vm146, %v100
    %148 = vst.msk [vmem:[#allocation2 + $0x8] sm:$0xff] %vm146, %v115
    %149 = vst.msk [vmem:[#allocation2 + $0x10] sm:$0xff] %vm146, %v130
    %150 = vst.msk [vmem:[#allocation2 + $0x18] sm:$0xff] %vm146, %v145
    %v151 = vtanh.pop %v59
    %v152 = vtanh.pop %v62
    %v153 = vtanh.pop %v65
    %v154 = vtanh.pop %v68
    %159 = vrot.lane.b32.xlu0 %v151, 96
    %v160 = vpop.permute.xlu0 %159
    %161 = vrot.lane.b32.xlu0 %v152, 96
    %v162 = vpop.permute.xlu0 %161
    %163 = vrot.lane.b32.xlu0 %v153, 96
    %v164 = vpop.permute.xlu0 %163
    %165 = vrot.lane.b32.xlu0 %v154, 96
    %v166 = vpop.permute.xlu0 %165
    %171 = vst.msk [vmem:[#allocation4] sm:$0xff] %vm146, %v160
    %172 = vst.msk [vmem:[#allocation4 + $0x8] sm:$0xff] %vm146, %v162
    %173 = vst.msk [vmem:[#allocation4 + $0x10] sm:$0xff] %vm146, %v164
    %174 = vst.msk [vmem:[#allocation4 + $0x18] sm:$0xff] %vm146, %v166
    // Predicated region
    $region14: #{tpu_custom_call.1} parent=1 // pred_check
      _
    $region15: #{tpu_custom_call.1} parent=1 // pred_check_branch
      %176 = sbr.rel (0) target = $region17
    $region16: #{tpu_custom_call.1} parent=1 // pred_region
      %178 = vsyncadd [#allocation3], 0
      %s179 = sshll.u32 [#allocation2], 4
      %s180 = int_to_ptr.vmem [resolvable:$true] %s179
      %s181 = sshll.u32 %s3, 4
      %s182 = int_to_ptr.hbm [resolvable:$true] %s181
      %187 = dma.vmem_to_hbm [thread:$0]  %s180, 512, %s182, [#allocation3], 128, 128, 8
    $region17: #{tpu_custom_call.1} parent=1 // pred_fallthru
      _
    // Predicated region
    $region18: #{tpu_custom_call.1} parent=1 // pred_check
      _
    $region19: #{tpu_custom_call.1} parent=1 // pred_check_branch
      %189 = sbr.rel (0) target = $region21
    $region20: #{tpu_custom_call.1} parent=1 // pred_region
      %191 = vsyncadd [#allocation5], 0
      %s192 = sshll.u32 [#allocation4], 4
      %s193 = int_to_ptr.vmem [resolvable:$true] %s192
      %s194 = sshll.u32 %s4, 4
      %s195 = int_to_ptr.hbm [resolvable:$true] %s194
      %200 = dma.vmem_to_hbm [thread:$0]  %s193, 512, %s195, [#allocation5], 128, 128, 8
    $region21: #{tpu_custom_call.1} parent=1 // pred_fallthru
      _
    // Predicated region
    $region22: #{tpu_custom_call.1} parent=1 // pred_check
      _
    $region23: #{tpu_custom_call.1} parent=1 // pred_check_branch
      %202 = sbr.rel (0) target = $region25
    $region24: #{tpu_custom_call.1} parent=1 // pred_region
      %204 = dma.done [#allocation3], 512
    $region25: #{tpu_custom_call.1} parent=1 // pred_fallthru
      _
    // Predicated region
    $region26: #{tpu_custom_call.1} parent=1 // pred_check
      _
    $region27: #{tpu_custom_call.1} parent=1 // pred_check_branch
      %206 = sbr.rel (0) target = $region29
    $region28: #{tpu_custom_call.1} parent=1 // pred_region
      %208 = dma.done [#allocation5], 512
    $region29: #{tpu_custom_call.1} parent=1 // pred_fallthru
      _
    %209 = vsyncpa [#allocation3], 1
    %210 = vsyncpa [#allocation5], 1

</llo_original>
